<compile_context>
chip_gen: v6e
topology: v6e:2x2x1
jax: 0.10.0
libtpu: 0.0.40
codegen_flags: <defaults>
</compile_context>

<pallas_src>
import jax
import jax.numpy as jnp
from jax.experimental import pallas as pl
from jax.experimental.pallas import tpu as pltpu


def _round_up(x: int, m: int) -> int:
    return (x + m - 1) // m * m


def _ceil_div(x: int, m: int) -> int:
    return -(-x // m)


def _sublane_align(dtype) -> int:
    itemsize = jnp.dtype(dtype).itemsize
    if itemsize >= 4:
        return 8
    if itemsize == 2:
        return 16
    return 32


def _fit_tile(dim: int, target: int, align: int) -> int:
    """Largest tile <= ~target (align-multiple) that minimizes padding of `dim`."""
    dim_a = _round_up(dim, align)
    target = max(_round_up(target, align), align)
    if dim_a <= target:
        return dim_a
    nt = _ceil_div(dim_a, target)
    return _round_up(_ceil_div(dim_a, nt), align)


def _vmem_budget_bytes() -> int:
    cap = None
    try:
        cap = getattr(pltpu.get_tpu_info(), "vmem_capacity_bytes", None)
    except Exception:
        cap = None
    if not cap:
        cap = 64 * 1024 * 1024  # conservative fallback: v7x per-TensorCore VMEM
    return (int(cap) * 3) // 4  # leave headroom for Mosaic-internal scratch


def _make_kernel(squeeze_batch: bool, use_acc: bool):
    def _partial(a, b):
        if squeeze_batch:
            return jnp.dot(a, b, preferred_element_type=jnp.float32)
        return jnp.einsum("bmk,bkn->bmn", a, b, preferred_element_type=jnp.float32)

    if use_acc:
        def kernel(a_ref, b_ref, o_ref, acc_ref):
            k = pl.program_id(3)

            @pl.when(k == 0)
            def _init():
                acc_ref[...] = jnp.zeros_like(acc_ref)

            acc_ref[...] += _partial(a_ref[...], b_ref[...])

            @pl.when(k == pl.num_programs(3) - 1)
            def _store():
                o_ref[...] = acc_ref[...].astype(o_ref.dtype)
    else:
        # f32 output: accumulate straight into the K-resident output tile.
        def kernel(a_ref, b_ref, o_ref):
            k = pl.program_id(3)
            part = _partial(a_ref[...], b_ref[...])

            @pl.when(k == 0)
            def _first():
                o_ref[...] = part

            @pl.when(k > 0)
            def _rest():
                o_ref[...] += part

    return kernel


def bmm(a: jax.Array, b: jax.Array, *,
        tm: int | None = None, tn: int | None = None, tk: int | None = None,
        bb: int | None = None,
        cast_inputs_to_bf16: bool = False) -> jax.Array:
    """Batched matmul: a (B, M, K) @ b (B, K, N) -> (B, M, N) (torch.bmm semantics)."""
    assert a.ndim == 3 and b.ndim == 3, "bmm expects rank-3 inputs"
    B, M, K = a.shape
    B2, K2, N = b.shape
    assert B == B2 and K == K2, f"incompatible shapes {a.shape} x {b.shape}"

    out_dtype = jnp.result_type(a.dtype, b.dtype)

    # Optional bf16 operand cast (off by default: preserves torch.bmm f32 math;
    # accumulation stays f32 either way).
    a_p = a.astype(jnp.bfloat16) if cast_inputs_to_bf16 else a
    b_p = b.astype(jnp.bfloat16) if cast_inputs_to_bf16 else b

    in_isz = max(a_p.dtype.itemsize, b_p.dtype.itemsize)
    out_isz = jnp.dtype(out_dtype).itemsize
    use_acc = out_dtype != jnp.float32
    budget = _vmem_budget_bytes()

    # --- minimal alignment padding targets ---
    sub_m = max(_sublane_align(a_p.dtype), _sublane_align(out_dtype))
    Mp0 = _round_up(M, sub_m)
    Kp0 = _round_up(K, 128)
    Np0 = _round_up(N, 128)

    def _est(bb_, tm_, tn_, tk_):
        e = 2 * bb_ * (tm_ * tk_ + tk_ * tn_) * in_isz     # double-buffered inputs
        e += 2 * bb_ * tm_ * tn_ * out_isz                  # double-buffered output
        if use_acc:
            e += bb_ * tm_ * tn_ * 4                        # f32 accumulator scratch
        return e

    # --- tile selection ---
    tm = _fit_tile(M, 512 if tm is None else tm, sub_m)
    tn = _fit_tile(N, 512 if tn is None else tn, 128)
    if tk is None:
        # Fold whole K into a single grid step when the panel fits VMEM.
        tk = Kp0 if _est(1, tm, tn, Kp0) <= budget else _fit_tile(K, 512, 128)
    else:
        tk = _fit_tile(K, tk, 128)

    # Shrink (K first, then N, then M) if the chosen tiles exceed the VMEM budget.
    while _est(1, tm, tn, tk) > budget:
        if tk > 128:
            tk = _round_up(tk // 2, 128)
        elif tn > 128:
            tn = _round_up(tn // 2, 128)
        elif tm > sub_m:
            tm = _round_up(tm // 2, sub_m)
        else:
            break

    # --- batch blocking: group tiny per-batch matmuls to amortize step overhead ---
    single_tile = (tm >= Mp0) and (tn >= Np0) and (tk >= Kp0)
    if bb is None:
        if B > 1 and single_tile:
            step_bytes = (tm * tk + tk * tn + tm * tn) * in_isz
            target_step = 1 << 20                     # ~1 MiB moved per grid step
            bb_want = max(1, _ceil_div(target_step, max(step_bytes, 1)))
            bb_vmem = max(1, budget // max(_est(1, tm, tn, tk), 1))
            bb = max(1, min(B, bb_want, bb_vmem))
        else:
            bb = 1
    bb = max(1, min(bb, B))

    # --- final padded extents (zeros in K contribute nothing; M/N pad sliced off) ---
    Bp = _round_up(B, bb)
    Mp = _round_up(Mp0, tm)
    Np = _round_up(Np0, tn)
    Kp = _round_up(Kp0, tk)

    if a_p.shape != (Bp, Mp, Kp):
        a_p = jnp.pad(a_p, ((0, Bp - B), (0, Mp - M), (0, Kp - K)))
    if b_p.shape != (Bp, Kp, Np):
        b_p = jnp.pad(b_p, ((0, Bp - B), (0, Kp - K), (0, Np - N)))

    grid = (Bp // bb, Mp // tm, Np // tn, Kp // tk)
    squeeze_batch = (bb == 1)

    if squeeze_batch:
        a_spec = pl.BlockSpec((None, tm, tk), lambda bi, i, j, k: (bi, i, k))
        b_spec = pl.BlockSpec((None, tk, tn), lambda bi, i, j, k: (bi, k, j))
        o_spec = pl.BlockSpec((None, tm, tn), lambda bi, i, j, k: (bi, i, j))
        scratch = [pltpu.VMEM((tm, tn), jnp.float32)] if use_acc else []
    else:
        a_spec = pl.BlockSpec((bb, tm, tk), lambda bi, i, j, k: (bi, i, k))
        b_spec = pl.BlockSpec((bb, tk, tn), lambda bi, i, j, k: (bi, k, j))
        o_spec = pl.BlockSpec((bb, tm, tn), lambda bi, i, j, k: (bi, i, j))
        scratch = [pltpu.VMEM((bb, tm, tn), jnp.float32)] if use_acc else []

    vmem_limit = int(min(budget, max(int(1.5 * _est(bb, tm, tn, tk)), 16 << 20)))

    # Bytes actually streamed: A is re-read once per N tile, B once per M tile.
    cost = pl.CostEstimate(
        flops=2 * Bp * Mp * Np * Kp,
        bytes_accessed=(Bp * Mp * Kp * a_p.dtype.itemsize * (Np // tn)
                        + Bp * Kp * Np * b_p.dtype.itemsize * (Mp // tm)
                        + Bp * Mp * Np * out_isz),
        transcendentals=0,
    )

    out = pl.pallas_call(
        _make_kernel(squeeze_batch, use_acc),
        out_shape=jax.ShapeDtypeStruct((Bp, Mp, Np), out_dtype),
        grid_spec=pltpu.PrefetchScalarGridSpec(
            num_scalar_prefetch=0,
            grid=grid,
            in_specs=[a_spec, b_spec],
            out_specs=o_spec,
            scratch_shapes=scratch,
        ),
        compiler_params=pltpu.CompilerParams(
            dimension_semantics=("parallel", "parallel", "parallel", "arbitrary"),
            vmem_limit_bytes=vmem_limit,
        ),
        cost_estimate=cost,
    )(a_p, b_p)

    return out[:B, :M, :N]


if __name__ == "__main__":
    key = jax.random.PRNGKey(0)
    k1, k2, k3, k4, k5, k6, k7, k8 = jax.random.split(key, 8)

    # 1) Small torch.bmm-like shapes: batch=2, M=8, K=32, N=16 (grouped-batch path).
    B, M, K, N = 2, 8, 32, 16
    a = jax.random.normal(k1, (B, M, K), dtype=jnp.float32)
    b = jax.random.normal(k2, (B, K, N), dtype=jnp.float32)
    out = jax.block_until_ready(bmm(a, b))
    ref = jnp.einsum("bmk,bkn->bmn", a, b)
    assert out.shape == (B, M, N), out.shape
    assert jnp.allclose(out, ref, atol=1e-4, rtol=1e-4), "mismatch (small)"

    # 2) Non-aligned K/N: exercises minimal padding + single-K-step fold.
    B2, M2, K2, N2 = 2, 128, 320, 192
    a2 = jax.random.normal(k3, (B2, M2, K2), dtype=jnp.float32)
    b2 = jax.random.normal(k4, (B2, K2, N2), dtype=jnp.float32)
    out2 = jax.block_until_ready(bmm(a2, b2))
    ref2 = jnp.einsum("bmk,bkn->bmn", a2, b2)
    assert out2.shape == (B2, M2, N2), out2.shape
    assert jnp.allclose(out2, ref2, atol=2e-3, rtol=2e-3), "mismatch (padded)"

    # 3) Forced small tiles: exercises the squeezed-batch, multi-K-step
    #    direct-into-output accumulation path.
    B3, M3, K3, N3 = 2, 256, 512, 256
    a3 = jax.random.normal(k5, (B3, M3, K3), dtype=jnp.float32)
    b3 = jax.random.normal(k6, (B3, K3, N3), dtype=jnp.float32)
    out3 = jax.block_until_ready(bmm(a3, b3, tm=128, tn=128, tk=128))
    ref3 = jnp.einsum("bmk,bkn->bmn", a3, b3)
    assert out3.shape == (B3, M3, N3), out3.shape
    assert jnp.allclose(out3, ref3, atol=2e-3, rtol=2e-3), "mismatch (tiled K)"

    # 4) bf16 operands: exercises the f32 scratch-accumulator path and 16-sublane
    #    alignment for the M dim.
    B4, M4, K4, N4 = 2, 24, 64, 48
    a4 = jax.random.normal(k7, (B4, M4, K4), dtype=jnp.float32).astype(jnp.bfloat16)
    b4 = jax.random.normal(k8, (B4, K4, N4), dtype=jnp.float32).astype(jnp.bfloat16)
    out4 = jax.block_until_ready(bmm(a4, b4))
    ref4 = jnp.einsum("bmk,bkn->bmn",
                      a4.astype(jnp.float32), b4.astype(jnp.float32))
    assert out4.shape == (B4, M4, N4), out4.shape
    assert jnp.allclose(out4.astype(jnp.float32), ref4, atol=0.15, rtol=0.05), \
        "mismatch (bf16)"

    print("KERNEL_OK")
</pallas_src>

<mosaic_0001>
module attributes {stable_mosaic.version = 11 : i64} {
  func.func @kernel(%arg0: i32, %arg1: i32, %arg2: i32, %arg3: i32, %arg4: memref<2x8x128xf32, #tpu.memory_space<vmem>>, %arg5: memref<2x128x128xf32, #tpu.memory_space<vmem>>, %arg6: memref<2x8x128xf32, #tpu.memory_space<vmem>>) attributes {dimension_semantics = [#tpu.dimension_semantics<parallel>, #tpu.dimension_semantics<parallel>, #tpu.dimension_semantics<parallel>, #tpu.dimension_semantics<arbitrary>], iteration_bounds = array<i64: 1, 1, 1, 1>, scalar_prefetch = 0 : i64, scratch_operands = 0 : i64, tpu.core_type = #tpu.core_type<tc>, window_params = [{transform_indices = @transform_0, window_bounds = array<i64: 2, 8, 128>}, {transform_indices = @transform_1, window_bounds = array<i64: 2, 128, 128>}, {transform_indices = @transform_2, window_bounds = array<i64: 2, 8, 128>}]} {
    %c0 = arith.constant 0 : index
    %c0_0 = arith.constant 0 : index
    %c0_1 = arith.constant 0 : index
    %0 = vector.load %arg4[%c0, %c0_0, %c0_1] : memref<2x8x128xf32, #tpu.memory_space<vmem>>, vector<2x8x128xf32>
    %c0_2 = arith.constant 0 : index
    %c0_3 = arith.constant 0 : index
    %c0_4 = arith.constant 0 : index
    %1 = vector.load %arg5[%c0_2, %c0_3, %c0_4] : memref<2x128x128xf32, #tpu.memory_space<vmem>>, vector<2x128x128xf32>
    "tpu.trace_start"() <{level = 10 : i32, message = "bmk,bkn->bmn"}> : () -> ()
    %cst = arith.constant dense<0.000000e+00> : vector<2x8x128xf32>
    %2 = tpu.matmul %0, %1, %cst {dimension_numbers = #tpu.dot_dimension_numbers<[2], [1], [1], [2], [0, 0, 0, 1, 1, 2], [0], [0]>} : vector<2x8x128xf32>, vector<2x128x128xf32>, vector<2x8x128xf32> -> vector<2x8x128xf32>
    %c0_i32 = arith.constant 0 : i32
    "tpu.trace_stop"() : () -> ()
    %3 = arith.cmpi eq, %arg3, %c0_i32 : i32
    %4 = arith.extui %3 : i1 to i32
    %c0_i32_5 = arith.constant 0 : i32
    %5 = arith.cmpi ne, %4, %c0_i32_5 : i32
    scf.if %5 {
      %c0_8 = arith.constant 0 : index
      %c0_9 = arith.constant 0 : index
      %c0_10 = arith.constant 0 : index
      %9 = vector.load %arg6[%c0_8, %c0_9, %c0_10] : memref<2x8x128xf32, #tpu.memory_space<vmem>>, vector<2x8x128xf32>
      tpu.vector_store %arg6[%c0_8, %c0_9, %c0_10], %2 {strides = array<i32>} : memref<2x8x128xf32, #tpu.memory_space<vmem>>, vector<2x8x128xf32>,
    } else {
    }
    %c0_i32_6 = arith.constant 0 : i32
    %6 = arith.cmpi sgt, %arg3, %c0_i32_6 : i32
    %7 = arith.extui %6 : i1 to i32
    %c0_i32_7 = arith.constant 0 : i32
    %8 = arith.cmpi ne, %7, %c0_i32_7 : i32
    scf.if %8 {
      %c0_8 = arith.constant 0 : index
      %c0_9 = arith.constant 0 : index
      %c0_10 = arith.constant 0 : index
      %9 = vector.load %arg6[%c0_8, %c0_9, %c0_10] : memref<2x8x128xf32, #tpu.memory_space<vmem>>, vector<2x8x128xf32>
      %10 = arith.addf %9, %2 : vector<2x8x128xf32>
      %c0_11 = arith.constant 0 : index
      %c0_12 = arith.constant 0 : index
      %c0_13 = arith.constant 0 : index
      %11 = vector.load %arg6[%c0_11, %c0_12, %c0_13] : memref<2x8x128xf32, #tpu.memory_space<vmem>>, vector<2x8x128xf32>
      tpu.vector_store %arg6[%c0_11, %c0_12, %c0_13], %10 {strides = array<i32>} : memref<2x8x128xf32, #tpu.memory_space<vmem>>, vector<2x8x128xf32>,
    } else {
    }
    return
  }
  func.func @transform_0(%arg0: i32, %arg1: i32, %arg2: i32, %arg3: i32) -> (i32, i32, i32) {
    %c0_i32 = arith.constant 0 : i32
    return %arg0, %arg1, %arg3 : i32, i32, i32
  }
  func.func @transform_1(%arg0: i32, %arg1: i32, %arg2: i32, %arg3: i32) -> (i32, i32, i32) {
    %c0_i32 = arith.constant 0 : i32
    return %arg0, %arg3, %arg2 : i32, i32, i32
  }
  func.func @transform_2(%arg0: i32, %arg1: i32, %arg2: i32, %arg3: i32) -> (i32, i32, i32) {
    %c0_i32 = arith.constant 0 : i32
    return %arg0, %arg1, %arg2 : i32, i32, i32
  }
}

</mosaic_0001>

<llo_original>
// kernel: tpu_custom_call.1
$region0: #{tpu_custom_call.1}
  #allocation0 [shape = 'u32[]', space=smem, size = 0x4, offset = 0x4, fixed_abs, tag = 'smem constant byte address 0x4 - core index']
  #allocation1 [shape = 'u32[144,128]{1,0:T(1,128)}', space=vmem, size = 0x12000, scoped, tag = 'internal scratch']
  %s0 = inlined_call_operand.hbm [shape: f32[2,8,128], index: 0, kind: input, shape index: {}]
  %s1 = inlined_call_operand.hbm [shape: f32[2,128,128], index: 1, kind: input, shape index: {}]
  %s2 = inlined_call_operand.hbm [shape: f32[2,8,128], index: 2, kind: output, shape index: {}]
  %s3 = sld [smem:[#allocation0]]
  $region34: #{tpu_custom_call.1} parent=0
    _
  %s5 = ssub.s32 1, %s3
  %s6 = scalar_select 0, %s5, %s3
  $region1: #{tpu_custom_call.1} parent=0
    #allocation2 [shape = 'u8[8192]{0}', space=vmem, size = 0x2000, scoped, tag = 'input window, operand 0, single buffered']
    #allocation3 [shape = 's32[1]{0}', space=sflag, size = 0x4, scoped, tag = 'scoped memory for tpu_custom_call.1']
    #allocation4 [shape = 's32[1]{0}', space=sflag, size = 0x4, scoped, tag = 'scoped memory for tpu_custom_call.1']
    #allocation5 [shape = 'u8[131072]{0}', space=vmem, size = 0x20000, scoped, tag = 'input window, operand 1, single buffered']
    #allocation6 [shape = 's32[1]{0}', space=sflag, size = 0x4, scoped, tag = 'scoped memory for tpu_custom_call.1']
    #allocation7 [shape = 'u8[8192]{0}', space=vmem, size = 0x2000, scoped, tag = 'output window, operand 0, single buffered']
    %7 = vsyncpa [#allocation3], 0
    %8 = vsyncpa [#allocation6], 0
    %9 = vsyncpa [#allocation4], 0
    // Predicated region
    $region2: #{tpu_custom_call.1} parent=1 // pred_check
      _
    $region3: #{tpu_custom_call.1} parent=1 // pred_check_branch
      %11 = sbr.rel (0) target = $region5
    $region4: #{tpu_custom_call.1} parent=1 // pred_region
      %s13 = ssub.s32 256, 256
      %14 = vsyncadd [#allocation3], %s13
      %s15 = sshll.u32 [#allocation2], 4
      %s16 = int_to_ptr.vmem [resolvable:$true] %s15
      %21 = dma.hbm_to_vmem [thread:$0]  %s0, 256, %s16, [#allocation3], 128, 128, 8
    $region5: #{tpu_custom_call.1} parent=1 // pred_fallthru
      _
    // Predicated region
    $region6: #{tpu_custom_call.1} parent=1 // pred_check
      _
    $region7: #{tpu_custom_call.1} parent=1 // pred_check_branch
      %23 = sbr.rel (0) target = $region9
    $region8: #{tpu_custom_call.1} parent=1 // pred_region
      %s25 = ssub.s32 4096, 4096
      %26 = vsyncadd [#allocation6], %s25
      %s27 = sshll.u32 [#allocation5], 4
      %s28 = int_to_ptr.vmem [resolvable:$true] %s27
      %33 = dma.hbm_to_vmem [thread:$0]  %s1, 4096, %s28, [#allocation6], 128, 128, 8
    $region9: #{tpu_custom_call.1} parent=1 // pred_fallthru
      _
    // Predicated region
    $region10: #{tpu_custom_call.1} parent=1 // pred_check
      _
    $region11: #{tpu_custom_call.1} parent=1 // pred_check_branch
      %35 = sbr.rel (0) target = $region13
    $region12: #{tpu_custom_call.1} parent=1 // pred_region
      %36 = dma.done [#allocation3], 256
    $region13: #{tpu_custom_call.1} parent=1 // pred_fallthru
      _
    // Predicated region
    $region14: #{tpu_custom_call.1} parent=1 // pred_check
      _
    $region15: #{tpu_custom_call.1} parent=1 // pred_check_branch
      %38 = sbr.rel (0) target = $region17
    $region16: #{tpu_custom_call.1} parent=1 // pred_region
      %39 = dma.done [#allocation6], 4096
    $region17: #{tpu_custom_call.1} parent=1 // pred_fallthru
      _
    %v40 = vld [vmem:[#allocation2] sm:$0xff]
    %v41 = vld [vmem:[#allocation2 + $0x8] sm:$0xff]
    %v42 = vld [vmem:[#allocation5] sm:$0xff]
    %v43 = vld [vmem:[#allocation5 + $0x8] sm:$0xff]
    %v44 = vld [vmem:[#allocation5 + $0x10] sm:$0xff]
    %v45 = vld [vmem:[#allocation5 + $0x18] sm:$0xff]
    %v46 = vld [vmem:[#allocation5 + $0x20] sm:$0xff]
    %v47 = vld [vmem:[#allocation5 + $0x28] sm:$0xff]
    %v48 = vld [vmem:[#allocation5 + $0x30] sm:$0xff]
    %v49 = vld [vmem:[#allocation5 + $0x38] sm:$0xff]
    %v50 = vld [vmem:[#allocation5 + $0x40] sm:$0xff]
    %v51 = vld [vmem:[#allocation5 + $0x48] sm:$0xff]
    %v52 = vld [vmem:[#allocation5 + $0x50] sm:$0xff]
    %v53 = vld [vmem:[#allocation5 + $0x58] sm:$0xff]
    %v54 = vld [vmem:[#allocation5 + $0x60] sm:$0xff]
    %v55 = vld [vmem:[#allocation5 + $0x68] sm:$0xff]
    %v56 = vld [vmem:[#allocation5 + $0x70] sm:$0xff]
    %v57 = vld [vmem:[#allocation5 + $0x78] sm:$0xff]
    %v58 = vld [vmem:[#allocation5 + $0x80] sm:$0xff]
    %v59 = vld [vmem:[#allocation5 + $0x88] sm:$0xff]
    %v60 = vld [vmem:[#allocation5 + $0x90] sm:$0xff]
    %v61 = vld [vmem:[#allocation5 + $0x98] sm:$0xff]
    %v62 = vld [vmem:[#allocation5 + $0xa0] sm:$0xff]
    %v63 = vld [vmem:[#allocation5 + $0xa8] sm:$0xff]
    %v64 = vld [vmem:[#allocation5 + $0xb0] sm:$0xff]
    %v65 = vld [vmem:[#allocation5 + $0xb8] sm:$0xff]
    %v66 = vld [vmem:[#allocation5 + $0xc0] sm:$0xff]
    %v67 = vld [vmem:[#allocation5 + $0xc8] sm:$0xff]
    %v68 = vld [vmem:[#allocation5 + $0xd0] sm:$0xff]
    %v69 = vld [vmem:[#allocation5 + $0xd8] sm:$0xff]
    %v70 = vld [vmem:[#allocation5 + $0xe0] sm:$0xff]
    %v71 = vld [vmem:[#allocation5 + $0xe8] sm:$0xff]
    %v72 = vld [vmem:[#allocation5 + $0xf0] sm:$0xff]
    %v73 = vld [vmem:[#allocation5 + $0xf8] sm:$0xff]
    %74 = vmatprep.subr.mxu0 0.0
    %75 = vmatpush1.msra.mxu0 %v57
    %76 = vmatprep.subr.mxu0 0.0
    %77 = vmatpush1.msra.mxu0 %v56
    %78 = vmatprep.subr.mxu0 0.0
    %79 = vmatpush1.msra.mxu0 %v55
    %80 = vmatprep.subr.mxu0 0.0
    %81 = vmatpush1.msra.mxu0 %v54
    %82 = vmatprep.subr.mxu0 0.0
    %83 = vmatpush1.msra.mxu0 %v53
    %84 = vmatprep.subr.mxu0 0.0
    %85 = vmatpush1.msra.mxu0 %v52
    %86 = vmatprep.subr.mxu0 0.0
    %87 = vmatpush1.msra.mxu0 %v51
    %88 = vmatprep.subr.mxu0 0.0
    %89 = vmatpush1.msra.mxu0 %v50
    %90 = vmatprep.subr.mxu0 0.0
    %91 = vmatpush1.msra.mxu0 %v49
    %92 = vmatprep.subr.mxu0 0.0
    %93 = vmatpush1.msra.mxu0 %v48
    %94 = vmatprep.subr.mxu0 0.0
    %95 = vmatpush1.msra.mxu0 %v47
    %96 = vmatprep.subr.mxu0 0.0
    %97 = vmatpush1.msra.mxu0 %v46
    %98 = vmatprep.subr.mxu0 0.0
    %99 = vmatpush1.msra.mxu0 %v45
    %100 = vmatprep.subr.mxu0 0.0
    %101 = vmatpush1.msra.mxu0 %v44
    %102 = vmatprep.subr.mxu0 0.0
    %103 = vmatpush1.msra.mxu0 %v43
    %104 = vmatprep.subr.mxu0 0.0
    %105 = vmatpush1.msra.mxu0 %v42
    %106 = vmatprep.subr.mxu0 0.0
    %107 = vmatpush2.msra.mxu0 0.0
    %108 = vmatprep.subr.mxu0 0.0
    %109 = vmatpush2.msra.mxu0 0.0
    %110 = vmatprep.subr.mxu0 0.0
    %111 = vmatpush2.msra.mxu0 0.0
    %112 = vmatprep.subr.mxu0 0.0
    %113 = vmatpush2.msra.mxu0 0.0
    %114 = vmatprep.subr.mxu0 0.0
    %115 = vmatpush2.msra.mxu0 0.0
    %116 = vmatprep.subr.mxu0 0.0
    %117 = vmatpush2.msra.mxu0 0.0
    %118 = vmatprep.subr.mxu0 0.0
    %119 = vmatpush2.msra.mxu0 0.0
    %120 = vmatprep.subr.mxu0 0.0
    %121 = vmatpush2.msra.mxu0 0.0
    %122 = vmatprep.subr.mxu0 0.0
    %123 = vmatpush2.msra.mxu0 0.0
    %124 = vmatprep.subr.mxu0 0.0
    %125 = vmatpush2.msra.mxu0 0.0
    %126 = vmatprep.subr.mxu0 0.0
    %127 = vmatpush2.msra.mxu0 0.0
    %128 = vmatprep.subr.mxu0 0.0
    %129 = vmatpush2.msra.mxu0 0.0
    %130 = vmatprep.subr.mxu0 0.0
    %131 = vmatpush2.msra.mxu0 0.0
    %132 = vmatprep.subr.mxu0 0.0
    %133 = vmatpush2.msra.mxu0 0.0
    %134 = vmatprep.subr.mxu0 0.0
    %135 = vmatpush2.msra.mxu0 0.0
    %136 = vmatprep.subr.mxu0 0.0
    %137 = vmatpush2.msra.mxu0 0.0
    %138 = vmatprep.mubr.f32.mxu0 0.0
    %139 = vmatmul.mubr.f32.gmra.mxu0 %v40
    %v140 = vpop.f32.mrf.mxu0
    %v141 = vadd.f32 0.0, %v140
    %v142 = vpop.f32.mrf.mxu0
    %143 = vdwg.mxu0
    %144 = vmatprep.subr.mxu0 0.0
    %145 = vmatpush1.msra.mxu0 %v73
    %146 = vmatprep.subr.mxu0 0.0
    %147 = vmatpush1.msra.mxu0 %v72
    %148 = vmatprep.subr.mxu0 0.0
    %149 = vmatpush1.msra.mxu0 %v71
    %150 = vmatprep.subr.mxu0 0.0
    %151 = vmatpush1.msra.mxu0 %v70
    %152 = vmatprep.subr.mxu0 0.0
    %153 = vmatpush1.msra.mxu0 %v69
    %154 = vmatprep.subr.mxu0 0.0
    %155 = vmatpush1.msra.mxu0 %v68
    %156 = vmatprep.subr.mxu0 0.0
    %157 = vmatpush1.msra.mxu0 %v67
    %158 = vmatprep.subr.mxu0 0.0
    %159 = vmatpush1.msra.mxu0 %v66
    %160 = vmatprep.subr.mxu0 0.0
    %161 = vmatpush1.msra.mxu0 %v65
    %162 = vmatprep.subr.mxu0 0.0
    %163 = vmatpush1.msra.mxu0 %v64
    %164 = vmatprep.subr.mxu0 0.0
    %165 = vmatpush1.msra.mxu0 %v63
    %166 = vmatprep.subr.mxu0 0.0
    %167 = vmatpush1.msra.mxu0 %v62
    %168 = vmatprep.subr.mxu0 0.0
    %169 = vmatpush1.msra.mxu0 %v61
    %170 = vmatprep.subr.mxu0 0.0
    %171 = vmatpush1.msra.mxu0 %v60
    %172 = vmatprep.subr.mxu0 0.0
    %173 = vmatpush1.msra.mxu0 %v59
    %174 = vmatprep.subr.mxu0 0.0
    %175 = vmatpush1.msra.mxu0 %v58
    %176 = vmatprep.subr.mxu0 0.0
    %177 = vmatpush2.msra.mxu0 0.0
    %178 = vmatprep.subr.mxu0 0.0
    %179 = vmatpush2.msra.mxu0 0.0
    %180 = vmatprep.subr.mxu0 0.0
    %181 = vmatpush2.msra.mxu0 0.0
    %182 = vmatprep.subr.mxu0 0.0
    %183 = vmatpush2.msra.mxu0 0.0
    %184 = vmatprep.subr.mxu0 0.0
    %185 = vmatpush2.msra.mxu0 0.0
    %186 = vmatprep.subr.mxu0 0.0
    %187 = vmatpush2.msra.mxu0 0.0
    %188 = vmatprep.subr.mxu0 0.0
    %189 = vmatpush2.msra.mxu0 0.0
    %190 = vmatprep.subr.mxu0 0.0
    %191 = vmatpush2.msra.mxu0 0.0
    %192 = vmatprep.subr.mxu0 0.0
    %193 = vmatpush2.msra.mxu0 0.0
    %194 = vmatprep.subr.mxu0 0.0
    %195 = vmatpush2.msra.mxu0 0.0
    %196 = vmatprep.subr.mxu0 0.0
    %197 = vmatpush2.msra.mxu0 0.0
    %198 = vmatprep.subr.mxu0 0.0
    %199 = vmatpush2.msra.mxu0 0.0
    %200 = vmatprep.subr.mxu0 0.0
    %201 = vmatpush2.msra.mxu0 0.0
    %202 = vmatprep.subr.mxu0 0.0
    %203 = vmatpush2.msra.mxu0 0.0
    %204 = vmatprep.subr.mxu0 0.0
    %205 = vmatpush2.msra.mxu0 0.0
    %206 = vmatprep.subr.mxu0 0.0
    %207 = vmatpush2.msra.mxu0 0.0
    %208 = vmatprep.mubr.f32.mxu0 0.0
    %209 = vmatmul.mubr.f32.gmra.mxu0 %v41
    %v210 = vpop.f32.mrf.mxu0
    %v211 = vadd.f32 0.0, %v210
    %v212 = vpop.f32.mrf.mxu0
    %213 = vdwg.mxu0
    %p214 = scmp.eq.s32.totalorder 0, 0
    // Predicated region
    $region18: #{tpu_custom_call.1} parent=1 // pred_check
      %p215 = pneg %p214
    $region19: #{tpu_custom_call.1} parent=1 // pred_check_branch
      %217 = sbr.rel (%p215) target = $region21
    $region20: #{tpu_custom_call.1} parent=1 // pred_region
      %218 = vst [vmem:[#allocation7] sm:$0xff] %v141
      %219 = vst [vmem:[#allocation7 + $0x8] sm:$0xff] %v211
    $region21: #{tpu_custom_call.1} parent=1 // pred_fallthru
      _
    %p220 = scmp.gt.s32.totalorder 0, 0
    // Predicated region
    $region22: #{tpu_custom_call.1} parent=1 // pred_check
      %p221 = pneg %p220
    $region23: #{tpu_custom_call.1} parent=1 // pred_check_branch
      %223 = sbr.rel (%p221) target = $region25
    $region24: #{tpu_custom_call.1} parent=1 // pred_region
      %v224 = vld [vmem:[#allocation7] sm:$0xff]
      %v225 = vld [vmem:[#allocation7 + $0x8] sm:$0xff]
      %v226 = vadd.f32 %v224, %v141
      %v227 = vadd.f32 %v225, %v211
      %228 = vst [vmem:[#allocation7] sm:$0xff] %v226
      %229 = vst [vmem:[#allocation7 + $0x8] sm:$0xff] %v227
    $region25: #{tpu_custom_call.1} parent=1 // pred_fallthru
      _
    // Predicated region
    $region26: #{tpu_custom_call.1} parent=1 // pred_check
      _
    $region27: #{tpu_custom_call.1} parent=1 // pred_check_branch
      %231 = sbr.rel (0) target = $region29
    $region28: #{tpu_custom_call.1} parent=1 // pred_region
      %s233 = ssub.s32 256, 256
      %234 = vsyncadd [#allocation4], %s233
      %s235 = sshll.u32 [#allocation7], 4
      %s236 = int_to_ptr.vmem [resolvable:$true] %s235
      %241 = dma.vmem_to_hbm [thread:$0]  %s236, 256, %s2, [#allocation4], 128, 128, 8
    $region29: #{tpu_custom_call.1} parent=1 // pred_fallthru
      _
    // Predicated region
    $region30: #{tpu_custom_call.1} parent=1 // pred_check
      _
    $region31: #{tpu_custom_call.1} parent=1 // pred_check_branch
      %243 = sbr.rel (0) target = $region33
    $region32: #{tpu_custom_call.1} parent=1 // pred_region
      %244 = dma.done [#allocation4], 256
    $region33: #{tpu_custom_call.1} parent=1 // pred_fallthru
      _
    %245 = vsyncpa [#allocation3], 1
    %246 = vsyncpa [#allocation6], 1
    %247 = vsyncpa [#allocation4], 1

</llo_original>
